<compile_context>
chip_gen: v7x
topology: tpu7x:2x2x1
jax: 0.10.0
libtpu: 0.0.40
codegen_flags: <defaults>
</compile_context>

<pallas_src>
import functools

import jax
import jax.numpy as jnp
from jax.experimental import pallas as pl
from jax.experimental.pallas import tpu as pltpu

_SATURATE = 20.0  # tanh(20.0) == 1.0 exactly in float32 -> carries b_a.


def _align(n, a):
    return -(-n // a) * a


def pack_manet_params(wf, bf, wh, bh, wa, ba, *, mxu_dtype=jnp.bfloat16):
    """One-time packing of MANet parameters into two dense slabs.

    proj (M+1, V+R+1): rows 0..M-1 = [Wf^T | Wh^T | bf+bh]; row M = [0..0, 20]
                       (the ones row of the data tile turns that row into a
                       tanh-saturated 1.0, which carries b_a in the align
                       matmul -- both biases are folded into MXU work).
    mix  (align16(V)+M, M+1): rows [0, V)          = expansion matrix E^T,
                              rows [r_w2, r_w2+M)  = [Wa^T | ba].
    Weights are stored as (in, out); biases as (out,).
    """
    V, M = wf.shape
    R = wh.shape[0]
    if V % M != 0:
        raise ValueError(
            f"video_encoding_size ({V}) must be divisible by num_feats ({M})")
    rep = V // M

    proj = jnp.zeros((M + 1, V + R + 1), jnp.float32)
    proj = proj.at[:M, :V].set(jnp.asarray(wf, jnp.float32).T)
    proj = proj.at[:M, V:V + R].set(jnp.asarray(wh, jnp.float32).T)
    proj = proj.at[:M, V + R].set(jnp.asarray(bf, jnp.float32).reshape(-1) +
                                  jnp.asarray(bh, jnp.float32).reshape(-1))
    proj = proj.at[M, V + R].set(_SATURATE)

    r_w2 = _align(V, 16)
    mix = jnp.zeros((r_w2 + M, M + 1), jnp.float32)
    expand = (jax.lax.broadcasted_iota(jnp.int32, (V, M), 0) // rep ==
              jax.lax.broadcasted_iota(jnp.int32, (V, M), 1)).astype(jnp.float32)
    mix = mix.at[:V, :M].set(expand)
    mix = mix.at[r_w2:r_w2 + M, :M].set(jnp.asarray(wa, jnp.float32).T)
    mix = mix.at[r_w2:r_w2 + M, M].set(jnp.asarray(ba, jnp.float32).reshape(-1))

    return proj.astype(mxu_dtype), mix.astype(mxu_dtype)


def _manet_kernel(xh_ref, proj_ref, mix_ref, o_ref, *, V, M, r_w2):
    mxu_dtype = proj_ref.dtype
    xh = xh_ref[...]                                     # (V+R+1, bt), io dtype
    xh_m = xh.astype(mxu_dtype)

    # Fused projection (+ both biases via the ones row). Row M -> 20.0.
    f_t = jnp.dot(proj_ref[...], xh_m,
                  preferred_element_type=jnp.float32)    # (M+1, bt) f32
    t = jnp.tanh(f_t)                                    # row M == 1.0 exactly

    # Align projection with b_a folded in as the (M+1)-th column.
    w2 = mix_ref[r_w2:r_w2 + M, :]                       # (M, M+1)
    logits = jnp.dot(w2, t.astype(mxu_dtype),
                     preferred_element_type=jnp.float32)  # (M, bt) f32

    # Stable softmax over the M feature groups (sublane axis); EUP reciprocal.
    m_max = jnp.max(logits, axis=0, keepdims=True)
    e = jnp.exp(logits - m_max)
    inv = pl.reciprocal(jnp.sum(e, axis=0, keepdims=True), approx=True)
    att = (e * inv).astype(mxu_dtype)                    # (M, bt)

    # Repeat each group weight over V//M consecutive rows via the MXU.
    expand = mix_ref[0:V, 0:M]                           # (V, M) 0/1 matrix
    att_full = jnp.dot(expand, att,
                       preferred_element_type=jnp.float32)  # (V, bt)

    x_t = xh[0:V, :].astype(jnp.float32)
    o_ref[...] = (x_t * att_full).astype(o_ref.dtype)


def _choose_batch_tile(B, V, R, io_itemsize, vmem_budget_bytes=16 << 20):
    """Largest lane-dense (multiple-of-128) batch tile under the VMEM budget."""
    if B <= 128:
        return B                       # single full-array tile (always legal)
    # Bytes per batch lane: double-buffered in/out tiles + f32 intermediates.
    per_lane = 2 * ((V + R + 1) + V) * io_itemsize + 4 * (2 * V + 32)
    cap = max(128, (vmem_budget_bytes // per_lane) // 128 * 128)
    bt = max(128, min(cap, 2048))
    # TODO(synk): on v7x, shrink bt so the grid has >= 2 steps and the
    # ("parallel",) grid axis shards across both TensorCores.
    return min(bt, _align(B, 128))


def manet_forward(x, h, proj, mix, *, block_batch=None):
    """x: (B, V), h: (1, B, R), packed params from pack_manet_params -> (B, V)."""
    B, V = x.shape
    h2 = h[0]                                            # squeeze(0) -> (B, R)
    R = h2.shape[-1]
    M = proj.shape[0] - 1
    r_w2 = mix.shape[0] - M
    assert proj.shape[1] == V + R + 1 and mix.shape[1] == M + 1

    io_dtype = x.dtype
    # Batch-on-lanes data tile: [x^T ; h^T ; 1] of shape (V+R+1, B).  The ones
    # row activates the fused-bias column of `proj`.  (Layout plumbing only.)
    xh = jnp.concatenate(
        [x.T, h2.astype(io_dtype).T, jnp.ones((1, B), io_dtype)], axis=0)

    bt = block_batch if block_batch is not None else _choose_batch_tile(
        B, V, R, jnp.dtype(io_dtype).itemsize)
    b_pad = _align(B, bt)
    if b_pad != B:
        xh = jnp.pad(xh, ((0, 0), (0, b_pad - B)))
    grid = (b_pad // bt,)

    def _param_spec(shape):
        if grid[0] > 1:
            # Grid-invariant parameter slab: single-buffered, DMA'd once.
            return pl.BlockSpec(shape, lambda i: (0, 0),
                                pipeline_mode=pl.Buffered(1))
        return pl.BlockSpec(shape, lambda i: (0, 0))

    kernel = functools.partial(_manet_kernel, V=V, M=M, r_w2=r_w2)
    out_t = pl.pallas_call(
        kernel,
        out_shape=jax.ShapeDtypeStruct((V, b_pad), io_dtype),
        grid_spec=pltpu.PrefetchScalarGridSpec(
            num_scalar_prefetch=0,
            grid=grid,
            in_specs=[
                pl.BlockSpec((V + R + 1, bt), lambda i: (0, i)),  # data tile
                _param_spec(proj.shape),                          # proj slab
                _param_spec(mix.shape),                           # mix slab
            ],
            out_specs=pl.BlockSpec((V, bt), lambda i: (0, i)),
        ),
        compiler_params=pltpu.CompilerParams(
            dimension_semantics=("parallel",),
            vmem_limit_bytes=32 << 20),
    )(xh, proj, mix)

    # (V, B) -> (B, V) to match the PyTorch module; batch-on-lanes consumers
    # should take out_t[:, :B] directly and skip this transpose.
    return out_t[:, :B].T


def manet_reference(x, h, wf, bf, wh, bh, wa, ba, *, num_feats):
    """Pure-JAX f32 reference reproducing the PyTorch forward exactly."""
    V = x.shape[1]
    pre = jnp.tanh(x @ wf + bf + h[0] @ wh + bh)
    att = jax.nn.softmax(pre @ wa + ba, axis=-1)
    return x * jnp.repeat(att, V // num_feats, axis=1)


if __name__ == "__main__":
    # Module-consistent small shapes: video_encoding_size V = 32, rnn_size
    # R = 16, num_feats M = 4.
    V, R, M = 32, 16, 4

    key = jax.random.PRNGKey(0)
    k = jax.random.split(key, 10)
    wf = jax.random.normal(k[0], (V, M), jnp.float32) * 0.1
    bf = jax.random.normal(k[1], (M,), jnp.float32) * 0.1
    wh = jax.random.normal(k[2], (R, M), jnp.float32) * 0.1
    bh = jax.random.normal(k[3], (M,), jnp.float32) * 0.1
    wa = jax.random.normal(k[4], (M, M), jnp.float32) * 0.1
    ba = jax.random.normal(k[5], (M,), jnp.float32) * 0.1

    proj, mix = pack_manet_params(wf, bf, wh, bh, wa, ba)  # one-time packing
    fwd = jax.jit(manet_forward, static_argnames=("block_batch",))

    # Tolerances: bf16 MXU operands (f32 accumulation) + approx EUP reciprocal.
    ATOL = RTOL = 2e-2

    # Test 1: toy batch, single full-array tile (grid = 1).
    B1 = 8
    x1 = jax.random.normal(k[6], (B1, V), jnp.float32)
    h1 = jax.random.normal(k[7], (1, B1, R), jnp.float32)
    out1 = jax.block_until_ready(fwd(x1, h1, proj, mix))
    ref1 = manet_reference(x1, h1, wf, bf, wh, bh, wa, ba, num_feats=M)
    assert out1.shape == (B1, V)
    assert jnp.allclose(out1, ref1, atol=ATOL, rtol=RTOL), "mismatch (toy batch)"

    # Test 2: larger batch -> lane-dense 128-wide tiles, grid = 2, batch
    # padding, and single-buffered (Buffered(1)) grid-invariant param slabs.
    B2 = 200
    x2 = jax.random.normal(k[8], (B2, V), jnp.float32)
    h2 = jax.random.normal(k[9], (1, B2, R), jnp.float32)
    out2 = jax.block_until_ready(fwd(x2, h2, proj, mix, block_batch=128))
    ref2 = manet_reference(x2, h2, wf, bf, wh, bh, wa, ba, num_feats=M)
    assert out2.shape == (B2, V)
    assert jnp.allclose(out2, ref2, atol=ATOL, rtol=RTOL), "mismatch (tiled batch)"

    print("KERNEL_OK")
</pallas_src>

<mosaic_0001>
module attributes {stable_mosaic.version = 11 : i64} {
  func.func @_manet_kernel(%arg0: i32, %arg1: memref<49x8xf32, #tpu.memory_space<vmem>>, %arg2: memref<5x49xbf16, #tpu.memory_space<vmem>>, %arg3: memref<36x5xbf16, #tpu.memory_space<vmem>>, %arg4: memref<32x8xf32, #tpu.memory_space<vmem>>) attributes {dimension_semantics = [#tpu.dimension_semantics<parallel>], iteration_bounds = array<i64: 1>, scalar_prefetch = 0 : i64, scratch_operands = 0 : i64, tpu.core_type = #tpu.core_type<tc>, window_params = [{transform_indices = @transform_0, window_bounds = array<i64: 49, 8>}, {pipeline_mode = #tpu.pipeline_mode<synchronous>, transform_indices = @transform_1, window_bounds = array<i64: 5, 49>}, {pipeline_mode = #tpu.pipeline_mode<synchronous>, transform_indices = @transform_2, window_bounds = array<i64: 36, 5>}, {transform_indices = @transform_3, window_bounds = array<i64: 32, 8>}]} {
    %c0 = arith.constant 0 : index
    %c0_0 = arith.constant 0 : index
    %0 = vector.load %arg1[%c0, %c0_0] : memref<49x8xf32, #tpu.memory_space<vmem>>, vector<49x8xf32>
    %1 = arith.truncf %0 : vector<49x8xf32> to vector<49x8xbf16>
    %c0_1 = arith.constant 0 : index
    %c0_2 = arith.constant 0 : index
    %2 = vector.load %arg2[%c0_1, %c0_2] : memref<5x49xbf16, #tpu.memory_space<vmem>>, vector<5x49xbf16>
    %cst = arith.constant dense<0.000000e+00> : vector<5x8xf32>
    %3 = tpu.matmul %2, %1, %cst {dimension_numbers = #tpu.dot_dimension_numbers<[1], [0], [0], [1], [0, 0, 1, 1], [], []>} : vector<5x49xbf16>, vector<49x8xbf16>, vector<5x8xf32> -> vector<5x8xf32>
    %4 = math.tanh %3 : vector<5x8xf32>
    %c32 = arith.constant 32 : index
    %c0_3 = arith.constant 0 : index
    %5 = vector.load %arg3[%c32, %c0_3] : memref<36x5xbf16, #tpu.memory_space<vmem>>, vector<4x5xbf16>
    %6 = arith.truncf %4 : vector<5x8xf32> to vector<5x8xbf16>
    %cst_4 = arith.constant dense<0.000000e+00> : vector<4x8xf32>
    %7 = tpu.matmul %5, %6, %cst_4 {dimension_numbers = #tpu.dot_dimension_numbers<[1], [0], [0], [1], [0, 0, 1, 1], [], []>} : vector<4x5xbf16>, vector<5x8xbf16>, vector<4x8xf32> -> vector<4x8xf32>
    %cst_5 = arith.constant dense<0xFF800000> : vector<8xf32>
    %8 = vector.multi_reduction <maximumf>, %7, %cst_5 [0] : vector<4x8xf32> to vector<8xf32>
    %9 = vector.shape_cast %8 : vector<8xf32> to vector<1x8xf32>
    %10 = vector.broadcast %9 : vector<1x8xf32> to vector<4x8xf32>
    %11 = arith.subf %7, %10 : vector<4x8xf32>
    %12 = math.exp %11 : vector<4x8xf32>
    %cst_6 = arith.constant dense<0.000000e+00> : vector<8xf32>
    %13 = vector.multi_reduction <add>, %12, %cst_6 [0] : vector<4x8xf32> to vector<8xf32>
    %14 = vector.shape_cast %13 : vector<8xf32> to vector<1x8xf32>
    %15 = tpu.reciprocal %14 {approx = true} : vector<1x8xf32> -> vector<1x8xf32>
    %16 = vector.broadcast %15 : vector<1x8xf32> to vector<4x8xf32>
    %17 = arith.mulf %12, %16 : vector<4x8xf32>
    %18 = arith.truncf %17 : vector<4x8xf32> to vector<4x8xbf16>
    %c0_7 = arith.constant 0 : index
    %c0_8 = arith.constant 0 : index
    %19 = vector.load %arg3[%c0_7, %c0_8] : memref<36x5xbf16, #tpu.memory_space<vmem>>, vector<32x4xbf16>
    %cst_9 = arith.constant dense<0.000000e+00> : vector<32x8xf32>
    %20 = tpu.matmul %19, %18, %cst_9 {dimension_numbers = #tpu.dot_dimension_numbers<[1], [0], [0], [1], [0, 0, 1, 1], [], []>} : vector<32x4xbf16>, vector<4x8xbf16>, vector<32x8xf32> -> vector<32x8xf32>
    %21 = vector.extract_strided_slice %0 {offsets = [0, 0], sizes = [32, 8], strides = [1, 1]} : vector<49x8xf32> to vector<32x8xf32>
    %22 = arith.mulf %21, %20 : vector<32x8xf32>
    %c0_10 = arith.constant 0 : index
    %c0_11 = arith.constant 0 : index
    %23 = vector.load %arg4[%c0_10, %c0_11] : memref<32x8xf32, #tpu.memory_space<vmem>>, vector<32x8xf32>
    tpu.vector_store %arg4[%c0_10, %c0_11], %22 {strides = array<i32>} : memref<32x8xf32, #tpu.memory_space<vmem>>, vector<32x8xf32>,
    return
  }
  func.func @transform_0(%arg0: i32) -> (i32, i32) {
    %c0_i32 = arith.constant 0 : i32
    %c0_i32_0 = arith.constant 0 : i32
    return %c0_i32, %arg0 : i32, i32
  }
  func.func @transform_1(%arg0: i32) -> (i32, i32) {
    %c0_i32 = arith.constant 0 : i32
    %c0_i32_0 = arith.constant 0 : i32
    %c0_i32_1 = arith.constant 0 : i32
    return %c0_i32, %c0_i32_0 : i32, i32
  }
  func.func @transform_2(%arg0: i32) -> (i32, i32) {
    %c0_i32 = arith.constant 0 : i32
    %c0_i32_0 = arith.constant 0 : i32
    %c0_i32_1 = arith.constant 0 : i32
    return %c0_i32, %c0_i32_0 : i32, i32
  }
  func.func @transform_3(%arg0: i32) -> (i32, i32) {
    %c0_i32 = arith.constant 0 : i32
    %c0_i32_0 = arith.constant 0 : i32
    return %c0_i32, %arg0 : i32, i32
  }
}

</mosaic_0001>

<llo_original>
// kernel: manet_forward.1
$region0: #{manet_forward.1}
  #allocation0 [shape = 'u32[]', space=smem, size = 0x4, offset = 0x4, fixed_abs, tag = 'smem constant byte address 0x4 - core index']
  #allocation1 [shape = 'u32[144,128]{1,0:T(1,128)}', space=vmem, size = 0x12000, scoped, tag = 'internal scratch']
  %s0 = inlined_call_operand.vmem [shape: f32[49,8], index: 0, kind: input, shape index: {}]
  %s1 = inlined_call_operand.vmem [shape: bf16[5,49], index: 1, kind: input, shape index: {}]
  %s2 = inlined_call_operand.vmem [shape: bf16[36,5], index: 2, kind: input, shape index: {}]
  %s3 = inlined_call_operand.vmem [shape: f32[32,8], index: 3, kind: output, shape index: {}]
  %s4 = sld [smem:[#allocation0]]
  $region22: #{manet_forward.1} parent=0
    _
  %s6 = ssub.s32 1, %s4
  %s7 = scalar_select 0, %s6, %s4
  // Predicated region
  $region2: #{manet_forward.1} parent=0 // pred_check
    _
  $region3: #{manet_forward.1} parent=0 // pred_check_branch
    %9 = sbr.rel (0) target = $region5
  $region4: #{manet_forward.1} parent=0 // pred_region
    _
  $region5: #{manet_forward.1} parent=0 // pred_fallthru
    _
  // Predicated region
  $region6: #{manet_forward.1} parent=0 // pred_check
    _
  $region7: #{manet_forward.1} parent=0 // pred_check_branch
    %11 = sbr.rel (0) target = $region9
  $region8: #{manet_forward.1} parent=0 // pred_region
    _
  $region9: #{manet_forward.1} parent=0 // pred_fallthru
    _
  // Predicated region
  $region10: #{manet_forward.1} parent=0 // pred_check
    _
  $region11: #{manet_forward.1} parent=0 // pred_check_branch
    %13 = sbr.rel (0) target = $region13
  $region12: #{manet_forward.1} parent=0 // pred_region
    _
  $region13: #{manet_forward.1} parent=0 // pred_fallthru
    _
  %v15 = vld [vmem:[%s0] sm:$0xff]
  %v16 = vld [vmem:[%s0 + $0x8] sm:$0xff]
  %v17 = vld [vmem:[%s0 + $0x10] sm:$0xff]
  %v18 = vld [vmem:[%s0 + $0x18] sm:$0xff]
  %v19 = vld [vmem:[%s0 + $0x20] sm:$0xff]
  %v20 = vld [vmem:[%s0 + $0x28] sm:$0xff]
  %v21 = vld [vmem:[%s0 + $0x30] sm:$0x1]
  %v22 = vpack.c.bf16 %v16, %v15
  %v23 = vpack.c.bf16 %v18, %v17
  %v24 = vpack.c.bf16 %v20, %v19
  %v25 = vpack.c.bf16 %v21, %v21
  %v26 = vld [vmem:[%s1] sm:$0x7]
  %vm27 = vcmask 400384
  %v29 = vsel %vm27, %v26, 0
  %vm31 = vcmask 1040384
  %v32 = vsel 0, 4294967295, 65535
  %v33 = vsel %vm31, %v32, 0
  %v35 = vand.u32 %v25, %v33
  %37 = vmatprep.subr.bf16.mxu0 0
  %38 = vmatpush1.bf16.msra.mxu0 %v22
  %39 = vmatprep.subr.bf16.mxu0 0
  %40 = vmatpush1.bf16.msra.mxu0 %v23
  %41 = vmatprep.subr.bf16.mxu0 0
  %42 = vmatpush1.bf16.msra.mxu0 %v24
  %43 = vmatprep.subr.bf16.mxu0 0
  %44 = vmatpush1.bf16.msra.mxu0 %v35
  %45 = vmatprep.subr.bf16.mxu0 0
  %46 = vmatpush1.bf16.msra.mxu0 0
  %47 = vmatprep.subr.bf16.mxu0 0
  %48 = vmatpush1.bf16.msra.mxu0 0
  %49 = vmatprep.subr.bf16.mxu0 0
  %50 = vmatpush1.bf16.msra.mxu0 0
  %51 = vmatprep.subr.bf16.mxu0 0
  %52 = vmatpush1.bf16.msra.mxu0 0
  %53 = vmatprep.subr.bf16.mxu0 0
  %54 = vmatpush1.bf16.msra.mxu0 0
  %55 = vmatprep.subr.bf16.mxu0 0
  %56 = vmatpush1.bf16.msra.mxu0 0
  %57 = vmatprep.subr.bf16.mxu0 0
  %58 = vmatpush1.bf16.msra.mxu0 0
  %59 = vmatprep.subr.bf16.mxu0 0
  %60 = vmatpush1.bf16.msra.mxu0 0
  %61 = vmatprep.subr.bf16.mxu0 0
  %62 = vmatpush1.bf16.msra.mxu0 0
  %63 = vmatprep.subr.bf16.mxu0 0
  %64 = vmatpush1.bf16.msra.mxu0 0
  %65 = vmatprep.subr.bf16.mxu0 0
  %66 = vmatpush1.bf16.msra.mxu0 0
  %67 = vmatprep.subr.bf16.mxu0 0
  %68 = vmatpush1.bf16.msra.mxu0 0
  %69 = vmatprep.mubr.bf16.mxu0 0
  %70 = vmatmul.mubr.bf16.gmra.mrb[0].mxu0 %v29
  %v71 = vpop.f32.mrb[0].mxu0
  %v72 = vadd.f32 0.0, %v71
  %v73 = vpop.f32.mrb[0].mxu0
  %v74 = vpop.f32.mrb[0].mxu0
  %v75 = vpop.f32.mrb[0].mxu0
  %76 = vdwg.mxu0
  %v77 = vtanh.pop %v72
  %v78 = vld [vmem:[%s2 + $0x10] sm:$0x3]
  %v79 = vpack.c.bf16 %v77, %v77
  %vm80 = vcmask 39936
  %v82 = vsel %vm80, %v78, 0
  %vm84 = vcmask 1041408
  %vm85 = vcmask 1042432
  %v86 = vsel %vm84, 4294967295, 65535
  %v87 = vsel %vm85, %v86, 0
  %v89 = vand.u32 %v79, %v87
  %91 = vmatprep.subr.bf16.mxu0 0
  %92 = vmatpush1.bf16.msra.mxu0 %v89
  %93 = vmatprep.subr.bf16.mxu0 0
  %94 = vmatpush1.bf16.msra.mxu0 0
  %95 = vmatprep.subr.bf16.mxu0 0
  %96 = vmatpush1.bf16.msra.mxu0 0
  %97 = vmatprep.subr.bf16.mxu0 0
  %98 = vmatpush1.bf16.msra.mxu0 0
  %99 = vmatprep.subr.bf16.mxu0 0
  %100 = vmatpush1.bf16.msra.mxu0 0
  %101 = vmatprep.subr.bf16.mxu0 0
  %102 = vmatpush1.bf16.msra.mxu0 0
  %103 = vmatprep.subr.bf16.mxu0 0
  %104 = vmatpush1.bf16.msra.mxu0 0
  %105 = vmatprep.subr.bf16.mxu0 0
  %106 = vmatpush1.bf16.msra.mxu0 0
  %107 = vmatprep.subr.bf16.mxu0 0
  %108 = vmatpush1.bf16.msra.mxu0 0
  %109 = vmatprep.subr.bf16.mxu0 0
  %110 = vmatpush1.bf16.msra.mxu0 0
  %111 = vmatprep.subr.bf16.mxu0 0
  %112 = vmatpush1.bf16.msra.mxu0 0
  %113 = vmatprep.subr.bf16.mxu0 0
  %114 = vmatpush1.bf16.msra.mxu0 0
  %115 = vmatprep.subr.bf16.mxu0 0
  %116 = vmatpush1.bf16.msra.mxu0 0
  %117 = vmatprep.subr.bf16.mxu0 0
  %118 = vmatpush1.bf16.msra.mxu0 0
  %119 = vmatprep.subr.bf16.mxu0 0
  %120 = vmatpush1.bf16.msra.mxu0 0
  %121 = vmatprep.subr.bf16.mxu0 0
  %122 = vmatpush1.bf16.msra.mxu0 0
  %123 = vmatprep.mubr.bf16.mxu0 0
  %124 = vmatmul.mubr.bf16.gmra.mrb[0].mxu0 %v82
  %v125 = vpop.f32.mrb[0].mxu0
  %v126 = vadd.f32 0.0, %v125
  %v127 = vpop.f32.mrb[0].mxu0
  %v128 = vpop.f32.mrb[0].mxu0
  %v129 = vpop.f32.mrb[0].mxu0
  %130 = vdwg.mxu0
  %vm131 = vcmask 60416
  %v132 = vsel %vm131, %v126, -inf
  %v133 = vrot.slane %v132, 4
  %v134 = vmax.f32 %v132, %v133
  %v135 = vrot.slane %v134, 2
  %v136 = vmax.f32 %v134, %v135
  %v137 = vrot.slane %v136, 1
  %v138 = vmax.f32 %v136, %v137
  %v139 = vsub.f32 %v126, %v138
  %v140 = vmul.f32 %v139, 1.442695
  %v141 = vpow.pop %v140
  %v142 = vsel %vm131, %v141, 0.0
  %v143 = vrot.slane %v142, 4
  %v144 = vadd.f32 %v142, %v143
  %v145 = vrot.slane %v144, 2
  %v146 = vadd.f32 %v144, %v145
  %v147 = vrot.slane %v146, 1
  %v148 = vadd.f32 %v146, %v147
  %v149 = vrcp.pop %v148
  %v150 = vmul.f32 %v141, %v149
  %v151 = vpack.c.bf16 %v150, %v150
  %v152 = vld [vmem:[%s2] sm:$0xf]
  %v153 = vld [vmem:[%s2 + $0x4] sm:$0xf]
  %v154 = vld [vmem:[%s2 + $0x8] sm:$0xf]
  %v155 = vld [vmem:[%s2 + $0xc] sm:$0xf]
  %v160 = vunpack.c.l.b16 %v152
  %v161 = vunpack.c.l.b16 %v153
  %v162 = vunpack.c.l.b16 %v154
  %v163 = vunpack.c.l.b16 %v155
  %v164 = vpack.c.b16 %v161, %v160
  %v165 = vpack.c.b16 %v163, %v162
  %vm166 = vcmask 31744
  %v168 = vsel %vm166, %v164, 0
  %v171 = vsel %vm166, %v165, 0
  %v174 = vsel %vm84, %v151, 0
  %176 = vmatprep.subr.bf16.mxu0 0
  %177 = vmatpush1.bf16.msra.mxu0 %v174
  %178 = vmatprep.subr.bf16.mxu0 0
  %179 = vmatpush1.bf16.msra.mxu0 0
  %180 = vmatprep.subr.bf16.mxu0 0
  %181 = vmatpush1.bf16.msra.mxu0 0
  %182 = vmatprep.subr.bf16.mxu0 0
  %183 = vmatpush1.bf16.msra.mxu0 0
  %184 = vmatprep.subr.bf16.mxu0 0
  %185 = vmatpush1.bf16.msra.mxu0 0
  %186 = vmatprep.subr.bf16.mxu0 0
  %187 = vmatpush1.bf16.msra.mxu0 0
  %188 = vmatprep.subr.bf16.mxu0 0
  %189 = vmatpush1.bf16.msra.mxu0 0
  %190 = vmatprep.subr.bf16.mxu0 0
  %191 = vmatpush1.bf16.msra.mxu0 0
  %192 = vmatprep.subr.bf16.mxu0 0
  %193 = vmatpush1.bf16.msra.mxu0 0
  %194 = vmatprep.subr.bf16.mxu0 0
  %195 = vmatpush1.bf16.msra.mxu0 0
  %196 = vmatprep.subr.bf16.mxu0 0
  %197 = vmatpush1.bf16.msra.mxu0 0
  %198 = vmatprep.subr.bf16.mxu0 0
  %199 = vmatpush1.bf16.msra.mxu0 0
  %200 = vmatprep.subr.bf16.mxu0 0
  %201 = vmatpush1.bf16.msra.mxu0 0
  %202 = vmatprep.subr.bf16.mxu0 0
  %203 = vmatpush1.bf16.msra.mxu0 0
  %204 = vmatprep.subr.bf16.mxu0 0
  %205 = vmatpush1.bf16.msra.mxu0 0
  %206 = vmatprep.subr.bf16.mxu0 0
  %207 = vmatpush1.bf16.msra.mxu0 0
  %208 = vmatprep.mubr.bf16.mxu0 0
  %209 = vmatmul.mubr.bf16.gmra.mrb[0].mxu0 %v168
  %v210 = vpop.f32.mrb[0].mxu0
  %v211 = vadd.f32 0.0, %v210
  %v212 = vpop.f32.mrb[0].mxu0
  %v213 = vpop.f32.mrb[0].mxu0
  %v214 = vadd.f32 0.0, %v213
  %v215 = vpop.f32.mrb[0].mxu0
  %216 = vmatprep.mubr.bf16.mxu0 0
  %217 = vmatmul.mubr.bf16.gmra.mrb[0].mxu0 %v171
  %v218 = vpop.f32.mrb[0].mxu0
  %v219 = vadd.f32 0.0, %v218
  %v220 = vpop.f32.mrb[0].mxu0
  %v221 = vpop.f32.mrb[0].mxu0
  %v222 = vadd.f32 0.0, %v221
  %v223 = vpop.f32.mrb[0].mxu0
  %224 = vdwg.mxu0
  %v225 = vmul.f32 %v15, %v211
  %v226 = vmul.f32 %v16, %v214
  %v227 = vmul.f32 %v17, %v219
  %v228 = vmul.f32 %v18, %v222
  %vm229 = vcmask 64512
  %230 = vst.msk [vmem:[%s3] sm:$0xff] %vm229, %v225
  %231 = vst.msk [vmem:[%s3 + $0x8] sm:$0xff] %vm229, %v226
  %232 = vst.msk [vmem:[%s3 + $0x10] sm:$0xff] %vm229, %v227
  %233 = vst.msk [vmem:[%s3 + $0x18] sm:$0xff] %vm229, %v228
  // Predicated region
  $region14: #{manet_forward.1} parent=0 // pred_check
    _
  $region15: #{manet_forward.1} parent=0 // pred_check_branch
    %235 = sbr.rel (0) target = $region17
  $region16: #{manet_forward.1} parent=0 // pred_region
    _
  $region17: #{manet_forward.1} parent=0 // pred_fallthru
    _
  // Predicated region
  $region18: #{manet_forward.1} parent=0 // pred_check
    _
  $region19: #{manet_forward.1} parent=0 // pred_check_branch
    %237 = sbr.rel (0) target = $region21
  $region20: #{manet_forward.1} parent=0 // pred_region
    _
  $region21: #{manet_forward.1} parent=0 // pred_fallthru
    _

</llo_original>
